<compile_context>
chip_gen: v7x
topology: tpu7x:2x2x1
jax: 0.10.0
libtpu: 0.0.40
codegen_flags: <defaults>
</compile_context>

<pallas_src>
import jax
import jax.numpy as jnp
from jax.experimental import pallas as pl
from jax.experimental.pallas import tpu as pltpu


def _round_up(x, m):
    return ((x + m - 1) // m) * m


def _cdiv(a, b):
    return -(-a // b)


# ---------------------------------------------------------------------------
# Kernels
# ---------------------------------------------------------------------------

def linreg_kernel(x_ref, w_ref, b_ref, o_ref):
    # x_ref: (tm, D) compute dtype  -- row tile of the batch
    # w_ref: (D, C)  compute dtype  -- whole pre-transposed weight (grid-constant)
    # b_ref: (1, C)  f32            -- bias (grid-constant)
    # o_ref: (tm, C) out dtype
    # Contraction over D goes straight to the MXU with an f32 accumulator; the
    # bias add is folded into the single epilogue expression.
    o_ref[...] = (
        jnp.dot(x_ref[...], w_ref[...], preferred_element_type=jnp.float32)
        + b_ref[...]
    ).astype(o_ref.dtype)


def linreg_ktiled_kernel(x_ref, w_ref, b_ref, o_ref, acc_ref):
    # Contraction-tiled fallback for weights too large to stay resident in VMEM.
    # Grid = (row tiles, k tiles); f32 accumulator lives in VMEM scratch and the
    # output block index is constant along k (classic accumulator pattern).
    k = pl.program_id(1)

    @pl.when(k == 0)
    def _():
        acc_ref[...] = jnp.zeros_like(acc_ref)

    acc_ref[...] += jnp.dot(x_ref[...], w_ref[...],
                            preferred_element_type=jnp.float32)

    @pl.when(k == pl.num_programs(1) - 1)
    def _():
        o_ref[...] = (acc_ref[...] + b_ref[...]).astype(o_ref.dtype)


# ---------------------------------------------------------------------------
# Wrapper
# ---------------------------------------------------------------------------

def prepare_params(weight, bias, compute_dtype):
    """One-time parameter prep (hoist out of the per-call path for repeated
    inference): weight (C, D) -> (D, C) in the compute dtype, bias -> (1, C) f32."""
    w_t = weight.T.astype(compute_dtype)
    b2d = bias.astype(jnp.float32).reshape(1, -1)
    return w_t, b2d


def logistic_regression_forward(x, weight, bias, *, compute_dtype=None,
                                tm=None, out_dtype=jnp.float32,
                                force_ktiled=False):
    """logits = x @ weight.T + bias   (nn.Linear forward).

    x: (N, D), weight: (C, D) (PyTorch Linear layout), bias: (C,) -> (N, C).
    compute_dtype=jnp.bfloat16 is the recommended fast path on v5e/v6e/v7x
    (halves the dominant HBM read traffic; MXU still accumulates in f32 and the
    bias add stays f32) but is opt-in because it loses input precision.
    """
    N, D = x.shape
    C, D2 = weight.shape
    assert D == D2
    assert bias.shape == (C,)

    if compute_dtype is None:
        compute_dtype = x.dtype
    itemsize = jnp.dtype(compute_dtype).itemsize
    out_bytes = jnp.dtype(out_dtype).itemsize

    # ---- Generation-aware VMEM budget, enforced via vmem_limit_bytes ----
    # v5e/v6e: 128 MiB physical -> ~89 MiB budget; v7x: 64 MiB -> ~44 MiB.
    try:
        vmem_cap = int(pltpu.get_tpu_info().vmem_capacity_bytes)
    except Exception:
        vmem_cap = 64 * 1024 * 1024  # conservative (v7x per-TC) fallback
    vmem_budget = min(int(vmem_cap * 0.7), 96 * 1024 * 1024)
    tile_budget = vmem_budget - (2 * 1024 * 1024)  # headroom for internal scratch

    w_t, b2d = prepare_params(weight, bias, compute_dtype)
    x_c = x.astype(compute_dtype)

    # Resident-weight cost: Pallas double-buffers by default even for a
    # grid-constant index_map, so count 2x the weight/bias bytes.
    w_bytes = 2 * D * C * itemsize
    b_bytes = 2 * C * 4
    per_row = 2 * (D * itemsize + C * out_bytes)  # double-buffered x row + out row
    tm_cap = (tile_budget - w_bytes - b_bytes) // per_row

    compiler_params = pltpu.CompilerParams(
        dimension_semantics=("parallel",),
        vmem_limit_bytes=int(vmem_budget),
    )

    if tm_cap >= 8 and not force_ktiled:
        # -------------------- resident-weight path --------------------
        if tm is None:
            # Aim for ~2 MiB of HBM traffic per grid step so the ~0.35 us
            # per-step overhead is negligible even for small D / C.
            row_bytes = D * itemsize + C * out_bytes
            tm_sel = max(256, _round_up((2 * 1024 * 1024) // max(row_bytes, 1), 8))
            tm_sel = min(tm_sel, (int(tm_cap) // 8) * 8)
            # >= 4 grid steps when N allows: load balance across the 2 TCs of
            # v7x plus DMA/compute overlap on single-TC v5e/v6e.
            if N >= 32:
                tm_sel = min(tm_sel, max(8, _round_up(_cdiv(N, 4), 8)))
            tm_sel = max(8, min(tm_sel, _round_up(N, 8)))
            # Rebalance so the zero-padded tail of x stays small.
            steps = _cdiv(N, tm_sel)
            tm_sel = max(8, _round_up(_cdiv(N, steps), 8))
        else:
            tm_sel = max(8, min(_round_up(tm, 8),
                                (int(tm_cap) // 8) * 8,
                                _round_up(N, 8)))

        N_pad = _round_up(N, tm_sel)
        if N_pad != N:
            x_c = jnp.pad(x_c, ((0, N_pad - N), (0, 0)))  # tail rows only

        out = pl.pallas_call(
            linreg_kernel,
            out_shape=jax.ShapeDtypeStruct((N_pad, C), out_dtype),
            grid_spec=pltpu.PrefetchScalarGridSpec(
                num_scalar_prefetch=0,
                grid=(N_pad // tm_sel,),
                in_specs=[
                    pl.BlockSpec((tm_sel, D), lambda i: (i, 0)),  # row tile of x
                    pl.BlockSpec((D, C), lambda i: (0, 0)),       # resident weight
                    pl.BlockSpec((1, C), lambda i: (0, 0)),       # resident bias
                ],
                out_specs=pl.BlockSpec((tm_sel, C), lambda i: (i, 0)),
            ),
            compiler_params=compiler_params,
        )(x_c, w_t, b2d)
        return out[:N]

    # -------------------- K-tiled fallback (huge D*C) --------------------
    # Weight cannot stay resident: tile the contraction dim with an f32
    # accumulator in VMEM scratch.
    tk = 2048
    while tk > 128 and 2 * tk * C * itemsize > tile_budget // 4:
        tk //= 2
    tk = max(128, min(tk, _round_up(D, 128)))
    D_pad = _round_up(D, tk)

    per_row_k = 2 * tk * itemsize + 2 * C * out_bytes + C * 4  # x + out + acc rows
    w_tile_bytes = 2 * tk * C * itemsize + 2 * C * 4
    tm_cap_k = (tile_budget - w_tile_bytes) // per_row_k
    # TODO(synk): if tm_cap_k < 8 (astronomical C) a class-dim tiling would
    # also be needed; not implemented.
    tm_sel = max(8, min((int(max(tm_cap_k, 8)) // 8) * 8, 1024, _round_up(N, 8)))
    N_pad = _round_up(N, tm_sel)

    if N_pad != N or D_pad != D:
        x_c = jnp.pad(x_c, ((0, N_pad - N), (0, D_pad - D)))
    w_p = jnp.pad(w_t, ((0, D_pad - D), (0, 0))) if D_pad != D else w_t

    out = pl.pallas_call(
        linreg_ktiled_kernel,
        out_shape=jax.ShapeDtypeStruct((N_pad, C), out_dtype),
        grid_spec=pltpu.PrefetchScalarGridSpec(
            num_scalar_prefetch=0,
            grid=(N_pad // tm_sel, D_pad // tk),
            in_specs=[
                pl.BlockSpec((tm_sel, tk), lambda i, k: (i, k)),
                pl.BlockSpec((tk, C), lambda i, k: (k, 0)),
                pl.BlockSpec((1, C), lambda i, k: (0, 0)),
            ],
            out_specs=pl.BlockSpec((tm_sel, C), lambda i, k: (i, 0)),
            scratch_shapes=[pltpu.VMEM((tm_sel, C), jnp.float32)],
        ),
        compiler_params=pltpu.CompilerParams(
            dimension_semantics=("parallel", "arbitrary"),
            vmem_limit_bytes=int(vmem_budget),
        ),
    )(x_c, w_p, b2d)
    return out[:N]


# ---------------------------------------------------------------------------
# Self-test
# ---------------------------------------------------------------------------

if __name__ == "__main__":
    # Small shapes consistent with the module: num_dim=32, num_class=8, batch N=16
    num_dim, num_class, N = 32, 8, 16

    key = jax.random.PRNGKey(0)
    kx, kw, kb = jax.random.split(key, 3)

    x = jax.random.normal(kx, (N, num_dim), dtype=jnp.float32)
    # Deterministic synthetic parameters (mimic nn.Linear's uniform init range).
    bound = 1.0 / jnp.sqrt(num_dim)
    weight = jax.random.uniform(kw, (num_class, num_dim), jnp.float32, -bound, bound)
    bias = jax.random.uniform(kb, (num_class,), jnp.float32, -bound, bound)

    # Plain-JAX reference of nn.Linear.
    ref = x @ weight.T + bias

    # Jit the wrapper so the tail pad / dtype cast / weight transpose fuse with
    # the pallas_call instead of making extra HBM round-trips.
    fwd = jax.jit(
        logistic_regression_forward,
        static_argnames=("compute_dtype", "tm", "out_dtype", "force_ktiled"),
    )

    # f32-operand resident-weight path: exact match.
    logits = jax.block_until_ready(fwd(x, weight, bias))
    assert logits.shape == (N, num_class)
    assert jnp.allclose(logits, ref, atol=1e-5, rtol=1e-5)

    # bf16-operand path (f32 MXU accumulate, f32 bias) — fast path on v5e/v6e/v7x.
    logits_bf16 = jax.block_until_ready(
        fwd(x, weight, bias, compute_dtype=jnp.bfloat16))
    assert logits_bf16.shape == (N, num_class)
    assert jnp.allclose(logits_bf16, ref, atol=3e-2, rtol=3e-2)

    # K-tiled fallback path (exercised here via force_ktiled to keep it tested).
    logits_kt = jax.block_until_ready(fwd(x, weight, bias, force_ktiled=True))
    assert logits_kt.shape == (N, num_class)
    assert jnp.allclose(logits_kt, ref, atol=1e-5, rtol=1e-5)

    print("KERNEL_OK")
</pallas_src>

<mosaic_0001>
module attributes {stable_mosaic.version = 11 : i64} {
  func.func @linreg_kernel(%arg0: i32, %arg1: memref<16x32xf32, #tpu.memory_space<vmem>>, %arg2: memref<32x8xf32, #tpu.memory_space<vmem>>, %arg3: memref<1x8xf32, #tpu.memory_space<vmem>>, %arg4: memref<16x8xf32, #tpu.memory_space<vmem>>) attributes {dimension_semantics = [#tpu.dimension_semantics<parallel>], iteration_bounds = array<i64: 1>, scalar_prefetch = 0 : i64, scratch_operands = 0 : i64, tpu.core_type = #tpu.core_type<tc>, window_params = [{transform_indices = @transform_0, window_bounds = array<i64: 16, 32>}, {pipeline_mode = #tpu.pipeline_mode<synchronous>, transform_indices = @transform_1, window_bounds = array<i64: 32, 8>}, {pipeline_mode = #tpu.pipeline_mode<synchronous>, transform_indices = @transform_2, window_bounds = array<i64: 1, 8>}, {transform_indices = @transform_3, window_bounds = array<i64: 16, 8>}]} {
    %c0 = arith.constant 0 : index
    %c0_0 = arith.constant 0 : index
    %0 = vector.load %arg1[%c0, %c0_0] : memref<16x32xf32, #tpu.memory_space<vmem>>, vector<16x32xf32>
    %c0_1 = arith.constant 0 : index
    %c0_2 = arith.constant 0 : index
    %1 = vector.load %arg2[%c0_1, %c0_2] : memref<32x8xf32, #tpu.memory_space<vmem>>, vector<32x8xf32>
    %cst = arith.constant dense<0.000000e+00> : vector<16x8xf32>
    %2 = tpu.matmul %0, %1, %cst {dimension_numbers = #tpu.dot_dimension_numbers<[1], [0], [0], [1], [0, 0, 1, 1], [], []>} : vector<16x32xf32>, vector<32x8xf32>, vector<16x8xf32> -> vector<16x8xf32>
    %c0_3 = arith.constant 0 : index
    %c0_4 = arith.constant 0 : index
    %3 = vector.load %arg3[%c0_3, %c0_4] : memref<1x8xf32, #tpu.memory_space<vmem>>, vector<1x8xf32>
    %4 = vector.broadcast %3 : vector<1x8xf32> to vector<16x8xf32>
    %5 = arith.addf %2, %4 : vector<16x8xf32>
    %c0_5 = arith.constant 0 : index
    %c0_6 = arith.constant 0 : index
    %6 = vector.load %arg4[%c0_5, %c0_6] : memref<16x8xf32, #tpu.memory_space<vmem>>, vector<16x8xf32>
    tpu.vector_store %arg4[%c0_5, %c0_6], %5 {strides = array<i32>} : memref<16x8xf32, #tpu.memory_space<vmem>>, vector<16x8xf32>,
    return
  }
  func.func @transform_0(%arg0: i32) -> (i32, i32) {
    %c0_i32 = arith.constant 0 : i32
    %c0_i32_0 = arith.constant 0 : i32
    return %arg0, %c0_i32 : i32, i32
  }
  func.func @transform_1(%arg0: i32) -> (i32, i32) {
    %c0_i32 = arith.constant 0 : i32
    %c0_i32_0 = arith.constant 0 : i32
    %c0_i32_1 = arith.constant 0 : i32
    return %c0_i32, %c0_i32_0 : i32, i32
  }
  func.func @transform_2(%arg0: i32) -> (i32, i32) {
    %c0_i32 = arith.constant 0 : i32
    %c0_i32_0 = arith.constant 0 : i32
    %c0_i32_1 = arith.constant 0 : i32
    return %c0_i32, %c0_i32_0 : i32, i32
  }
  func.func @transform_3(%arg0: i32) -> (i32, i32) {
    %c0_i32 = arith.constant 0 : i32
    %c0_i32_0 = arith.constant 0 : i32
    return %arg0, %c0_i32 : i32, i32
  }
}

</mosaic_0001>

<llo_original>
// kernel: logistic_regression_forward.1
$region0: #{logistic_regression_forward.1}
  #allocation0 [shape = 'u32[]', space=smem, size = 0x4, offset = 0x4, fixed_abs, tag = 'smem constant byte address 0x4 - core index']
  #allocation1 [shape = 'u32[144,128]{1,0:T(1,128)}', space=vmem, size = 0x12000, scoped, tag = 'internal scratch']
  %s0 = inlined_call_operand.vmem [shape: f32[16,32], index: 0, kind: input, shape index: {}]
  %s1 = inlined_call_operand.vmem [shape: f32[32,8], index: 1, kind: input, shape index: {}]
  %s2 = inlined_call_operand.vmem [shape: f32[1,8], index: 2, kind: input, shape index: {}]
  %s3 = inlined_call_operand.vmem [shape: f32[16,8], index: 3, kind: output, shape index: {}]
  %s4 = sld [smem:[#allocation0]]
  $region22: #{logistic_regression_forward.1} parent=0
    _
  %s6 = ssub.s32 1, %s4
  %s7 = scalar_select 0, %s6, %s4
  // Predicated region
  $region2: #{logistic_regression_forward.1} parent=0 // pred_check
    _
  $region3: #{logistic_regression_forward.1} parent=0 // pred_check_branch
    %9 = sbr.rel (0) target = $region5
  $region4: #{logistic_regression_forward.1} parent=0 // pred_region
    _
  $region5: #{logistic_regression_forward.1} parent=0 // pred_fallthru
    _
  // Predicated region
  $region6: #{logistic_regression_forward.1} parent=0 // pred_check
    _
  $region7: #{logistic_regression_forward.1} parent=0 // pred_check_branch
    %11 = sbr.rel (0) target = $region9
  $region8: #{logistic_regression_forward.1} parent=0 // pred_region
    _
  $region9: #{logistic_regression_forward.1} parent=0 // pred_fallthru
    _
  // Predicated region
  $region10: #{logistic_regression_forward.1} parent=0 // pred_check
    _
  $region11: #{logistic_regression_forward.1} parent=0 // pred_check_branch
    %13 = sbr.rel (0) target = $region13
  $region12: #{logistic_regression_forward.1} parent=0 // pred_region
    _
  $region13: #{logistic_regression_forward.1} parent=0 // pred_fallthru
    _
  %v14 = vld [vmem:[%s0] sm:$0xff]
  %v15 = vld [vmem:[%s0 + $0x8] sm:$0xff]
  %v16 = vld [vmem:[%s1] sm:$0xff]
  %v17 = vld [vmem:[%s1 + $0x8] sm:$0xff]
  %v18 = vld [vmem:[%s1 + $0x10] sm:$0xff]
  %v19 = vld [vmem:[%s1 + $0x18] sm:$0xff]
  %v20 = vld [vmem:[%s2] sm:$0x1]
  %v22 = vlaneseq
  %v23 = vshrl.u32 %v22, 7
  %v24 = vsub.s32 0, %v23
  %v25 = vrot.slane %v20, %v24
  %vm27 = vcmask 261120
  %v29 = vsel %vm27, %v14, 0
  %v32 = vsel %vm27, %v15, 0
  %34 = vmatprep.subr.mxu0 0.0
  %35 = vmatpush1.msra.mxu0 %v16
  %36 = vmatprep.subr.mxu0 0.0
  %37 = vmatpush1.msra.mxu0 %v17
  %38 = vmatprep.subr.mxu0 0.0
  %39 = vmatpush1.msra.mxu0 %v18
  %40 = vmatprep.subr.mxu0 0.0
  %41 = vmatpush1.msra.mxu0 %v19
  %42 = vmatprep.subr.mxu0 0.0
  %43 = vmatpush1.msra.mxu0 0.0
  %44 = vmatprep.subr.mxu0 0.0
  %45 = vmatpush1.msra.mxu0 0.0
  %46 = vmatprep.subr.mxu0 0.0
  %47 = vmatpush1.msra.mxu0 0.0
  %48 = vmatprep.subr.mxu0 0.0
  %49 = vmatpush1.msra.mxu0 0.0
  %50 = vmatprep.subr.mxu0 0.0
  %51 = vmatpush1.msra.mxu0 0.0
  %52 = vmatprep.subr.mxu0 0.0
  %53 = vmatpush1.msra.mxu0 0.0
  %54 = vmatprep.subr.mxu0 0.0
  %55 = vmatpush1.msra.mxu0 0.0
  %56 = vmatprep.subr.mxu0 0.0
  %57 = vmatpush1.msra.mxu0 0.0
  %58 = vmatprep.subr.mxu0 0.0
  %59 = vmatpush1.msra.mxu0 0.0
  %60 = vmatprep.subr.mxu0 0.0
  %61 = vmatpush1.msra.mxu0 0.0
  %62 = vmatprep.subr.mxu0 0.0
  %63 = vmatpush1.msra.mxu0 0.0
  %64 = vmatprep.subr.mxu0 0.0
  %65 = vmatpush1.msra.mxu0 0.0
  %66 = vmatprep.subr.mxu0 0.0
  %67 = vmatpush1.msra.mxu0 0.0
  %68 = vmatprep.subr.mxu0 0.0
  %69 = vmatpush1.msra.mxu0 0.0
  %70 = vmatprep.subr.mxu0 0.0
  %71 = vmatpush1.msra.mxu0 0.0
  %72 = vmatprep.subr.mxu0 0.0
  %73 = vmatpush1.msra.mxu0 0.0
  %74 = vmatprep.subr.mxu0 0.0
  %75 = vmatpush1.msra.mxu0 0.0
  %76 = vmatprep.subr.mxu0 0.0
  %77 = vmatpush1.msra.mxu0 0.0
  %78 = vmatprep.subr.mxu0 0.0
  %79 = vmatpush1.msra.mxu0 0.0
  %80 = vmatprep.subr.mxu0 0.0
  %81 = vmatpush1.msra.mxu0 0.0
  %82 = vmatprep.subr.mxu0 0.0
  %83 = vmatpush1.msra.mxu0 0.0
  %84 = vmatprep.subr.mxu0 0.0
  %85 = vmatpush1.msra.mxu0 0.0
  %86 = vmatprep.subr.mxu0 0.0
  %87 = vmatpush1.msra.mxu0 0.0
  %88 = vmatprep.subr.mxu0 0.0
  %89 = vmatpush1.msra.mxu0 0.0
  %90 = vmatprep.subr.mxu0 0.0
  %91 = vmatpush1.msra.mxu0 0.0
  %92 = vmatprep.subr.mxu0 0.0
  %93 = vmatpush1.msra.mxu0 0.0
  %94 = vmatprep.subr.mxu0 0.0
  %95 = vmatpush1.msra.mxu0 0.0
  %96 = vmatprep.subr.mxu0 0.0
  %97 = vmatpush1.msra.mxu0 0.0
  %98 = vmatprep.mubr.f32.mxu0 0.0
  %99 = vmatmul.mubr.f32.gmra.mrb[0].mxu0 %v29
  %v100 = vpop.f32.mrb[0].mxu0
  %v101 = vadd.f32 %v25, %v100
  %v102 = vpop.f32.mrb[0].mxu0
  %103 = vmatprep.mubr.f32.mxu0 0.0
  %104 = vmatmul.mubr.f32.gmra.mrb[0].mxu0 %v32
  %v105 = vpop.f32.mrb[0].mxu0
  %v106 = vadd.f32 %v25, %v105
  %v107 = vpop.f32.mrb[0].mxu0
  %108 = vdwg.mxu0
  %vm109 = vcmask 64512
  %110 = vst.msk [vmem:[%s3] sm:$0xff] %vm109, %v101
  %111 = vst.msk [vmem:[%s3 + $0x8] sm:$0xff] %vm109, %v106
  // Predicated region
  $region14: #{logistic_regression_forward.1} parent=0 // pred_check
    _
  $region15: #{logistic_regression_forward.1} parent=0 // pred_check_branch
    %113 = sbr.rel (0) target = $region17
  $region16: #{logistic_regression_forward.1} parent=0 // pred_region
    _
  $region17: #{logistic_regression_forward.1} parent=0 // pred_fallthru
    _
  // Predicated region
  $region18: #{logistic_regression_forward.1} parent=0 // pred_check
    _
  $region19: #{logistic_regression_forward.1} parent=0 // pred_check_branch
    %115 = sbr.rel (0) target = $region21
  $region20: #{logistic_regression_forward.1} parent=0 // pred_region
    _
  $region21: #{logistic_regression_forward.1} parent=0 // pred_fallthru
    _

</llo_original>
